<compile_context>
chip_gen: v5e
topology: v5e:2x2
jax: 0.10.0
libtpu: 0.0.40
codegen_flags: <defaults>
</compile_context>

<pallas_src>
import functools

import jax
import jax.numpy as jnp
from jax import lax
from jax.experimental import pallas as pl
from jax.experimental.pallas import tpu as pltpu


_INV_SQRT2 = 0.7071067811865476  # 1/sqrt(2), exact-GELU (erf) constant


def _round_up(x, m):
    return ((x + m - 1) // m) * m


def _cdiv(a, b):
    return (a + b - 1) // b


def _single_buffer_supported():
    # pl.Buffered(1) keeps constant-index (resident) weight blocks single
    # buffered so they do not pay the 2x double-buffering VMEM tax.
    try:
        pl.BlockSpec((8, 128), lambda i: (0, 0), pipeline_mode=pl.Buffered(1))
        return True
    except Exception:
        return False


_SINGLE_BUFFER_OK = _single_buffer_supported()


def _tpu_generation():
    try:
        kind = jax.devices()[0].device_kind.lower()
    except Exception:
        return 6
    for g in (7, 6, 5, 4):
        if f"v{g}" in kind or f"tpu{g}" in kind:
            return g
    return 6


def _vmem_capacity_bytes(gen):
    try:
        return int(pltpu.get_tpu_info().vmem_capacity_bytes)
    except Exception:
        return (64 << 20) if gen >= 7 else (128 << 20)


def _gelu(h, approximate):
    if approximate:
        # tanh approximation routes through the EUP (otherwise-idle slot when
        # the kernel is VALU-bound); numerics differ slightly from exact erf.
        return jax.nn.gelu(h, approximate=True)
    return 0.5 * h * (1.0 + lax.erf(h * _INV_SQRT2))


# ---------------------------------------------------------------------------
# Kernels
# ---------------------------------------------------------------------------


def _ffn_resident_kernel(x_ref, w1_ref, b1_ref, w2_ref, b2_ref, o_ref, *,
                         approximate):
    # Fast path: w1/b1/w2/b2 resident in VMEM (constant index_maps); one fused
    # pass per row tile, output written directly (no accumulator scratch).
    # x_ref: (tm, Fp)  w1_ref: (Fp, Hp)  b1_ref: (1, Hp)
    # w2_ref: (Hp, Fp) b2_ref: (1, Fp)  o_ref: (tm, Fp)
    x = x_ref[...]  # native dtype (bf16 stays bf16) for full MXU rate
    h = jnp.dot(x, w1_ref[...], preferred_element_type=jnp.float32)
    h = h + b1_ref[...].astype(jnp.float32)
    h = _gelu(h, approximate)
    # dropout1: eval-mode identity.
    out = jnp.dot(h.astype(x.dtype), w2_ref[...],
                  preferred_element_type=jnp.float32)
    out = out + b2_ref[...].astype(jnp.float32)
    # dropout2: eval-mode identity.
    o_ref[...] = out.astype(o_ref.dtype)


def _ffn_split_kernel(x_ref, w1_ref, b1_ref, w2_ref, b2_ref, o_ref, acc_ref, *,
                      approximate):
    # Split path: grid axis 1 tiles the hidden dim H; fc2 partial sums live in
    # an f32 VMEM accumulator.
    # x_ref: (tm, Fp)  w1_ref: (Fp, th)  b1_ref: (Hp//th, th) resident
    # w2_ref: (th, Fp) b2_ref: (1, Fp) resident  acc_ref: (tm, Fp) f32
    k = pl.program_id(1)

    @pl.when(k == 0)
    def _():
        acc_ref[...] = jnp.zeros_like(acc_ref)

    x = x_ref[...]
    h = jnp.dot(x, w1_ref[...], preferred_element_type=jnp.float32)
    # b1 is resident; row k of the reshaped (Hp//th, th) table is this chunk.
    h = h + b1_ref[k, :].astype(jnp.float32)
    h = _gelu(h, approximate)
    # dropout1: eval-mode identity.
    acc_ref[...] += jnp.dot(h.astype(x.dtype), w2_ref[...],
                            preferred_element_type=jnp.float32)

    @pl.when(k == pl.num_programs(1) - 1)
    def _():
        out = acc_ref[...] + b2_ref[...].astype(jnp.float32)
        # dropout2: eval-mode identity.
        o_ref[...] = out.astype(o_ref.dtype)


# ---------------------------------------------------------------------------
# Tiling / VMEM configuration
# ---------------------------------------------------------------------------


def _fast_bytes(tm, Fp, Hp, itemsize, wfac):
    weights = wfac * (2 * Fp * Hp + Hp + Fp) * itemsize   # resident w1,w2,b1,b2
    io = 2 * 2 * tm * Fp * itemsize                        # x + out, double-buffered
    interm = tm * Hp * 4 + tm * Fp * 4                     # f32 h tile + f32 out
    return weights + io + interm


def _split_bytes(tm, th, Fp, Hp, itemsize):
    dbuf = 2 * (tm * Fp + Fp * th + th * Fp + Fp + tm * Fp) * itemsize
    b1_res = 2 * Hp * itemsize
    acc = tm * Fp * 4
    h_tile = tm * th * 4
    return dbuf + b1_res + acc + h_tile


def _select_config(M, F, H, itemsize, force_split):
    gen = _tpu_generation()
    cap = _vmem_capacity_bytes(gen)
    # ~50 of 64 MiB on v7x, 100 of 128 MiB on v5e/v6e (default scoped limit is
    # much smaller, so vmem_limit_bytes is always passed explicitly).
    budget = min(int(cap * 0.78), 100 << 20)
    wfac = 1 if _SINGLE_BUFFER_OK else 2

    Fp = _round_up(F, 128)
    Hp_full = _round_up(H, 128)

    # Row tile: large on v5e/v6e (amortizes weight streaming in the split
    # path), 512 on v7x; >= 2 row blocks on v7x so both TensorCores work.
    tm_default = {5: 512, 6: 1024, 7: 512}.get(gen, 512)
    nblk = max(1, _cdiv(M, tm_default))
    if gen >= 7 and M > 8:
        nblk = max(nblk, 2)
    tm = _round_up(_cdiv(M, nblk), 8)

    # Resident-weights fast path.
    weight_bytes = (2 * Fp * Hp_full + Hp_full + Fp) * itemsize
    if (not force_split) and wfac * weight_bytes <= int(budget * 0.45):
        tm_f = tm
        while _fast_bytes(tm_f, Fp, Hp_full, itemsize, wfac) > budget and tm_f > 8:
            tm_f = max(8, _round_up(tm_f // 2, 8))
        if _fast_bytes(tm_f, Fp, Hp_full, itemsize, wfac) <= budget:
            est = _fast_bytes(tm_f, Fp, Hp_full, itemsize, wfac)
            return dict(path="fast", tm=tm_f, th=Hp_full, Fp=Fp, Hp=Hp_full,
                        Mp=_round_up(M, tm_f), est=est, budget=budget)

    # Split path over H.  th=256 on v5e (single store slot), 512 on v6e/v7x.
    th_default = 256 if gen <= 5 else 512
    th = max(128, min(th_default, Hp_full))
    th = _round_up(th, 128)
    Hp = _round_up(H, th)
    while _split_bytes(tm, th, Fp, Hp, itemsize) > budget and (th > 128 or tm > 8):
        if th > 128:
            th = max(128, _round_up(th // 2, 128))
        else:
            tm = max(8, _round_up(tm // 2, 8))
        Hp = _round_up(H, th)
    est = _split_bytes(tm, th, Fp, Hp, itemsize)
    return dict(path="split", tm=tm, th=th, Fp=Fp, Hp=Hp,
                Mp=_round_up(M, tm), est=est, budget=budget)


# ---------------------------------------------------------------------------
# Wrapper
# ---------------------------------------------------------------------------


@functools.partial(jax.jit, static_argnames=("approximate_gelu", "force_split"))
def feed_forward(x, w1, b1, w2, b2, *, approximate_gelu=False, force_split=False):
    """Eval-mode FeedForward. x: [B,S,F]; w1: [F,H]; b1: [H]; w2: [H,F]; b2: [F]."""
    B, S, F = x.shape
    H = w1.shape[1]
    M = B * S
    itemsize = jnp.dtype(x.dtype).itemsize

    cfg = _select_config(M, F, H, itemsize, force_split)
    tm, th = cfg["tm"], cfg["th"]
    Fp, Hp, Mp = cfg["Fp"], cfg["Hp"], cfg["Mp"]

    # Zero padding is exact: padded x cols / w1 rows contribute nothing to
    # fc1; padded w1 cols give h = gelu(0) = 0 against zero w2 rows; padded
    # output rows/cols are sliced off.  Pads are skipped when already aligned.
    # TODO(synk): production callers should pre-pad / cache the weights once
    # outside the hot path instead of padding inside every forward call.
    x2d = x.reshape(M, F)
    if Mp != M or Fp != F:
        x2d = jnp.pad(x2d, ((0, Mp - M), (0, Fp - F)))
    w1p = w1 if (Fp == F and Hp == H) else jnp.pad(w1, ((0, Fp - F), (0, Hp - H)))
    w2p = w2 if (Fp == F and Hp == H) else jnp.pad(w2, ((0, Hp - H), (0, Fp - F)))
    b1p = b1 if Hp == H else jnp.pad(b1, (0, Hp - H))
    b2p = (b2 if Fp == F else jnp.pad(b2, (0, Fp - F))).reshape(1, Fp)

    vmem_limit = int(min(cfg["budget"], max(32 << 20, int(cfg["est"] * 1.25))))

    if cfg["path"] == "fast":
        b1p = b1p.reshape(1, Hp)
        kernel = functools.partial(_ffn_resident_kernel,
                                   approximate=approximate_gelu)

        def _resident_spec(shape):
            if _SINGLE_BUFFER_OK:
                return pl.BlockSpec(shape, lambda i: (0, 0),
                                    pipeline_mode=pl.Buffered(1))
            return pl.BlockSpec(shape, lambda i: (0, 0))

        grid_spec = pltpu.PrefetchScalarGridSpec(
            num_scalar_prefetch=0,
            grid=(Mp // tm,),
            in_specs=[
                pl.BlockSpec((tm, Fp), lambda i: (i, 0)),   # x rows
                _resident_spec((Fp, Hp)),                   # w1 (resident)
                _resident_spec((1, Hp)),                    # b1 (resident)
                _resident_spec((Hp, Fp)),                   # w2 (resident)
                _resident_spec((1, Fp)),                    # b2 (resident)
            ],
            out_specs=pl.BlockSpec((tm, Fp), lambda i: (i, 0)),
        )
        dim_sem = ("parallel",)
        bytes_accessed = (2 * M * F + 2 * F * H + H + F) * itemsize
    else:
        b1p = b1p.reshape(Hp // th, th)
        kernel = functools.partial(_ffn_split_kernel,
                                   approximate=approximate_gelu)
        grid_spec = pltpu.PrefetchScalarGridSpec(
            num_scalar_prefetch=0,
            grid=(Mp // tm, Hp // th),
            in_specs=[
                pl.BlockSpec((tm, Fp), lambda i, k: (i, 0)),        # x rows
                pl.BlockSpec((Fp, th), lambda i, k: (0, k)),        # w1 H-chunk
                pl.BlockSpec((Hp // th, th), lambda i, k: (0, 0)),  # b1 (resident)
                pl.BlockSpec((th, Fp), lambda i, k: (k, 0)),        # w2 H-chunk
                pl.BlockSpec((1, Fp), lambda i, k: (0, 0)),         # b2 (resident)
            ],
            out_specs=pl.BlockSpec((tm, Fp), lambda i, k: (i, 0)),
            scratch_shapes=[pltpu.VMEM((tm, Fp), jnp.float32)],
        )
        dim_sem = ("parallel", "arbitrary")
        # Weights are re-streamed once per row tile on this path.
        bytes_accessed = (2 * M * F) * itemsize \
            + (Mp // tm) * (2 * Fp * Hp + Hp) * itemsize + Fp * itemsize

    cost = pl.CostEstimate(
        flops=4 * M * F * H,          # two matmuls
        transcendentals=M * H,        # erf / tanh
        bytes_accessed=int(bytes_accessed),
    )

    out2d = pl.pallas_call(
        kernel,
        out_shape=jax.ShapeDtypeStruct((Mp, Fp), x.dtype),
        grid_spec=grid_spec,
        compiler_params=pltpu.CompilerParams(
            dimension_semantics=dim_sem,
            vmem_limit_bytes=vmem_limit,
        ),
        cost_estimate=cost,
    )(x2d, w1p, b1p, w2p, b2p)

    if Mp != M or Fp != F:
        out2d = out2d[:M, :F]
    return out2d.reshape(B, S, F)


# ---------------------------------------------------------------------------
# Demo / self-test
# ---------------------------------------------------------------------------


def _reference(x, w1, b1, w2, b2):
    h = jnp.dot(x, w1, precision=lax.Precision.HIGHEST) + b1
    h = jax.nn.gelu(h, approximate=False)
    return jnp.dot(h, w2, precision=lax.Precision.HIGHEST) + b2


if __name__ == "__main__":
    # Small shapes consistent with the module: FeedForward(num_features=32,
    # expansion_factor=4, dropout=0.1) applied to x of shape [batch, seq, feat].
    B, S, F = 2, 8, 32
    EXPANSION = 4
    H = EXPANSION * F

    key = jax.random.PRNGKey(0)
    kx, k1, k2, k3, k4 = jax.random.split(key, 5)

    x = jax.random.normal(kx, (B, S, F), dtype=jnp.float32)

    # Deterministic PyTorch-Linear-style init, stored pre-transposed [in, out].
    bound1 = 1.0 / jnp.sqrt(F)
    w1 = jax.random.uniform(k1, (F, H), jnp.float32, -bound1, bound1)
    b1 = jax.random.uniform(k2, (H,), jnp.float32, -bound1, bound1)
    bound2 = 1.0 / jnp.sqrt(H)
    w2 = jax.random.uniform(k3, (H, F), jnp.float32, -bound2, bound2)
    b2 = jax.random.uniform(k4, (F,), jnp.float32, -bound2, bound2)

    ref = _reference(x, w1, b1, w2, b2)

    # Resident-weights fast path (weights easily fit VMEM at these shapes).
    out = feed_forward(x, w1, b1, w2, b2)
    jax.block_until_ready(out)
    assert out.shape == (B, S, F)
    assert jnp.allclose(out, ref, atol=1e-4, rtol=1e-4)

    # H-split path (forced), exercising the accumulator / pl.when epilogue.
    out_split = feed_forward(x, w1, b1, w2, b2, force_split=True)
    jax.block_until_ready(out_split)
    assert jnp.allclose(out_split, ref, atol=1e-4, rtol=1e-4)

    # bf16 path sanity check (native-dtype MXU inputs, f32 accumulation).
    out_bf16 = feed_forward(
        x.astype(jnp.bfloat16), w1.astype(jnp.bfloat16), b1.astype(jnp.bfloat16),
        w2.astype(jnp.bfloat16), b2.astype(jnp.bfloat16))
    jax.block_until_ready(out_bf16)
    assert jnp.allclose(out_bf16.astype(jnp.float32), ref, atol=5e-2, rtol=5e-2)

    print("KERNEL_OK")
</pallas_src>

<mosaic_0001>
module attributes {stable_mosaic.version = 11 : i64} {
  func.func @_ffn_resident_kernel(%arg0: i32, %arg1: memref<16x128xf32, #tpu.memory_space<vmem>>, %arg2: memref<128x128xf32, #tpu.memory_space<vmem>>, %arg3: memref<1x128xf32, #tpu.memory_space<vmem>>, %arg4: memref<128x128xf32, #tpu.memory_space<vmem>>, %arg5: memref<1x128xf32, #tpu.memory_space<vmem>>, %arg6: memref<16x128xf32, #tpu.memory_space<vmem>>) attributes {dimension_semantics = [#tpu.dimension_semantics<parallel>], iteration_bounds = array<i64: 1>, scalar_prefetch = 0 : i64, scratch_operands = 0 : i64, tpu.core_type = #tpu.core_type<tc>, window_params = [{transform_indices = @transform_0, window_bounds = array<i64: 16, 128>}, {pipeline_mode = #tpu.pipeline_mode<synchronous>, transform_indices = @transform_1, window_bounds = array<i64: 128, 128>}, {pipeline_mode = #tpu.pipeline_mode<synchronous>, transform_indices = @transform_2, window_bounds = array<i64: 1, 128>}, {pipeline_mode = #tpu.pipeline_mode<synchronous>, transform_indices = @transform_3, window_bounds = array<i64: 128, 128>}, {pipeline_mode = #tpu.pipeline_mode<synchronous>, transform_indices = @transform_4, window_bounds = array<i64: 1, 128>}, {transform_indices = @transform_5, window_bounds = array<i64: 16, 128>}]} {
    %c0 = arith.constant 0 : index
    %c0_0 = arith.constant 0 : index
    %0 = vector.load %arg1[%c0, %c0_0] : memref<16x128xf32, #tpu.memory_space<vmem>>, vector<16x128xf32>
    %c0_1 = arith.constant 0 : index
    %c0_2 = arith.constant 0 : index
    %1 = vector.load %arg2[%c0_1, %c0_2] : memref<128x128xf32, #tpu.memory_space<vmem>>, vector<128x128xf32>
    %cst = arith.constant dense<0.000000e+00> : vector<16x128xf32>
    %2 = tpu.matmul %0, %1, %cst {dimension_numbers = #tpu.dot_dimension_numbers<[1], [0], [0], [1], [0, 0, 1, 1], [], []>} : vector<16x128xf32>, vector<128x128xf32>, vector<16x128xf32> -> vector<16x128xf32>
    %c0_3 = arith.constant 0 : index
    %c0_4 = arith.constant 0 : index
    %3 = vector.load %arg3[%c0_3, %c0_4] : memref<1x128xf32, #tpu.memory_space<vmem>>, vector<1x128xf32>
    %4 = vector.broadcast %3 : vector<1x128xf32> to vector<16x128xf32>
    %5 = arith.addf %2, %4 : vector<16x128xf32>
    %cst_5 = arith.constant 5.000000e-01 : f32
    %6 = vector.broadcast %cst_5 : f32 to vector<16x128xf32>
    %7 = arith.mulf %6, %5 : vector<16x128xf32>
    %cst_6 = arith.constant 0.707106769 : f32
    %8 = vector.broadcast %cst_6 : f32 to vector<16x128xf32>
    %9 = arith.mulf %5, %8 : vector<16x128xf32>
    %10 = math.erf %9 : vector<16x128xf32>
    %cst_7 = arith.constant 1.000000e+00 : f32
    %11 = vector.broadcast %cst_7 : f32 to vector<16x128xf32>
    %12 = arith.addf %11, %10 : vector<16x128xf32>
    %13 = arith.mulf %7, %12 : vector<16x128xf32>
    %c0_8 = arith.constant 0 : index
    %c0_9 = arith.constant 0 : index
    %14 = vector.load %arg4[%c0_8, %c0_9] : memref<128x128xf32, #tpu.memory_space<vmem>>, vector<128x128xf32>
    %cst_10 = arith.constant dense<0.000000e+00> : vector<16x128xf32>
    %15 = tpu.matmul %13, %14, %cst_10 {dimension_numbers = #tpu.dot_dimension_numbers<[1], [0], [0], [1], [0, 0, 1, 1], [], []>} : vector<16x128xf32>, vector<128x128xf32>, vector<16x128xf32> -> vector<16x128xf32>
    %c0_11 = arith.constant 0 : index
    %c0_12 = arith.constant 0 : index
    %16 = vector.load %arg5[%c0_11, %c0_12] : memref<1x128xf32, #tpu.memory_space<vmem>>, vector<1x128xf32>
    %17 = vector.broadcast %16 : vector<1x128xf32> to vector<16x128xf32>
    %18 = arith.addf %15, %17 : vector<16x128xf32>
    %c0_13 = arith.constant 0 : index
    %c0_14 = arith.constant 0 : index
    %19 = vector.load %arg6[%c0_13, %c0_14] : memref<16x128xf32, #tpu.memory_space<vmem>>, vector<16x128xf32>
    tpu.vector_store %arg6[%c0_13, %c0_14], %18 {strides = array<i32>} : memref<16x128xf32, #tpu.memory_space<vmem>>, vector<16x128xf32>,
    return
  }
  func.func @transform_0(%arg0: i32) -> (i32, i32) {
    %c0_i32 = arith.constant 0 : i32
    %c0_i32_0 = arith.constant 0 : i32
    return %arg0, %c0_i32 : i32, i32
  }
  func.func @transform_1(%arg0: i32) -> (i32, i32) {
    %c0_i32 = arith.constant 0 : i32
    %c0_i32_0 = arith.constant 0 : i32
    %c0_i32_1 = arith.constant 0 : i32
    return %c0_i32, %c0_i32_0 : i32, i32
  }
  func.func @transform_2(%arg0: i32) -> (i32, i32) {
    %c0_i32 = arith.constant 0 : i32
    %c0_i32_0 = arith.constant 0 : i32
    %c0_i32_1 = arith.constant 0 : i32
    return %c0_i32, %c0_i32_0 : i32, i32
  }
  func.func @transform_3(%arg0: i32) -> (i32, i32) {
    %c0_i32 = arith.constant 0 : i32
    %c0_i32_0 = arith.constant 0 : i32
    %c0_i32_1 = arith.constant 0 : i32
    return %c0_i32, %c0_i32_0 : i32, i32
  }
  func.func @transform_4(%arg0: i32) -> (i32, i32) {
    %c0_i32 = arith.constant 0 : i32
    %c0_i32_0 = arith.constant 0 : i32
    %c0_i32_1 = arith.constant 0 : i32
    return %c0_i32, %c0_i32_0 : i32, i32
  }
  func.func @transform_5(%arg0: i32) -> (i32, i32) {
    %c0_i32 = arith.constant 0 : i32
    %c0_i32_0 = arith.constant 0 : i32
    return %arg0, %c0_i32 : i32, i32
  }
}

</mosaic_0001>

<llo_original>
// kernel: feed_forward.1
$region0: #{feed_forward.1}
  #allocation0 [shape = 'u32[]', space=smem, size = 0x4, offset = 0x4, fixed_abs, tag = 'smem constant byte address 0x4 - core index']
  #allocation1 [shape = 'u32[72,128]{1,0:T(1,128)}', space=vmem, size = 0x9000, scoped, tag = 'internal scratch']
  %s0 = inlined_call_operand.vmem [shape: f32[16,128], index: 0, kind: input, shape index: {}]
  %s1 = inlined_call_operand.vmem [shape: f32[128,128], index: 1, kind: input, shape index: {}]
  %s2 = inlined_call_operand.vmem [shape: f32[1,128], index: 2, kind: input, shape index: {}]
  %s3 = inlined_call_operand.vmem [shape: f32[128,128], index: 3, kind: input, shape index: {}]
  %s4 = inlined_call_operand.vmem [shape: f32[1,128], index: 4, kind: input, shape index: {}]
  %s5 = inlined_call_operand.vmem [shape: f32[16,128], index: 5, kind: output, shape index: {}]
  %s6 = sld [smem:[#allocation0]]
  $region30: #{feed_forward.1} parent=0
    _
  %s8 = ssub.s32 1, %s6
  %s9 = scalar_select 0, %s8, %s6
  // Predicated region
  $region2: #{feed_forward.1} parent=0 // pred_check
    _
  $region3: #{feed_forward.1} parent=0 // pred_check_branch
    %11 = sbr.rel (0) target = $region5
  $region4: #{feed_forward.1} parent=0 // pred_region
    _
  $region5: #{feed_forward.1} parent=0 // pred_fallthru
    _
  // Predicated region
  $region6: #{feed_forward.1} parent=0 // pred_check
    _
  $region7: #{feed_forward.1} parent=0 // pred_check_branch
    %13 = sbr.rel (0) target = $region9
  $region8: #{feed_forward.1} parent=0 // pred_region
    _
  $region9: #{feed_forward.1} parent=0 // pred_fallthru
    _
  // Predicated region
  $region10: #{feed_forward.1} parent=0 // pred_check
    _
  $region11: #{feed_forward.1} parent=0 // pred_check_branch
    %15 = sbr.rel (0) target = $region13
  $region12: #{feed_forward.1} parent=0 // pred_region
    _
  $region13: #{feed_forward.1} parent=0 // pred_fallthru
    _
  // Predicated region
  $region14: #{feed_forward.1} parent=0 // pred_check
    _
  $region15: #{feed_forward.1} parent=0 // pred_check_branch
    %17 = sbr.rel (0) target = $region17
  $region16: #{feed_forward.1} parent=0 // pred_region
    _
  $region17: #{feed_forward.1} parent=0 // pred_fallthru
    _
  // Predicated region
  $region18: #{feed_forward.1} parent=0 // pred_check
    _
  $region19: #{feed_forward.1} parent=0 // pred_check_branch
    %19 = sbr.rel (0) target = $region21
  $region20: #{feed_forward.1} parent=0 // pred_region
    _
  $region21: #{feed_forward.1} parent=0 // pred_fallthru
    _
  %v20 = vld [vmem:[%s0] sm:$0xff]
  %v21 = vld [vmem:[%s0 + $0x8] sm:$0xff]
  %v22 = vld [vmem:[%s1] sm:$0xff]
  %v23 = vld [vmem:[%s1 + $0x8] sm:$0xff]
  %v24 = vld [vmem:[%s1 + $0x10] sm:$0xff]
  %v25 = vld [vmem:[%s1 + $0x18] sm:$0xff]
  %v26 = vld [vmem:[%s1 + $0x20] sm:$0xff]
  %v27 = vld [vmem:[%s1 + $0x28] sm:$0xff]
  %v28 = vld [vmem:[%s1 + $0x30] sm:$0xff]
  %v29 = vld [vmem:[%s1 + $0x38] sm:$0xff]
  %v30 = vld [vmem:[%s1 + $0x40] sm:$0xff]
  %v31 = vld [vmem:[%s1 + $0x48] sm:$0xff]
  %v32 = vld [vmem:[%s1 + $0x50] sm:$0xff]
  %v33 = vld [vmem:[%s1 + $0x58] sm:$0xff]
  %v34 = vld [vmem:[%s1 + $0x60] sm:$0xff]
  %v35 = vld [vmem:[%s1 + $0x68] sm:$0xff]
  %v36 = vld [vmem:[%s1 + $0x70] sm:$0xff]
  %v37 = vld [vmem:[%s1 + $0x78] sm:$0xff]
  %v38 = vld [vmem:[%s2] sm:$0x1]
  %v40 = vperm.slane %v38, 0
  %42 = vmatpush.msra.mxu0 %v37
  %43 = vmatpush.msra.mxu0 %v36
  %44 = vmatpush.msra.mxu0 %v35
  %45 = vmatpush.msra.mxu0 %v34
  %46 = vmatpush.msra.mxu0 %v33
  %47 = vmatpush.msra.mxu0 %v32
  %48 = vmatpush.msra.mxu0 %v31
  %49 = vmatpush.msra.mxu0 %v30
  %50 = vmatpush.msra.mxu0 %v29
  %51 = vmatpush.msra.mxu0 %v28
  %52 = vmatpush.msra.mxu0 %v27
  %53 = vmatpush.msra.mxu0 %v26
  %54 = vmatpush.msra.mxu0 %v25
  %55 = vmatpush.msra.mxu0 %v24
  %56 = vmatpush.msra.mxu0 %v23
  %57 = vmatpush.msra.mxu0 %v22
  %58 = vmatmul.f32.gmra.mxu0 %v20
  %v59 = vpop.f32.mrf.mxu0
  %v60 = vadd.f32 %v40, %v59
  %61 = vmatmul.f32.gmra.mxu0 %v21
  %v62 = vpop.f32.mrf.mxu0
  %v63 = vadd.f32 %v40, %v62
  %64 = vdwg.mxu0
  %v65 = vmul.f32 %v60, 0.5
  %v66 = vmul.f32 %v63, 0.5
  %v67 = vmul.f32 %v60, 0.70710677
  %v68 = vmul.f32 %v63, 0.70710677
  %v69 = vmul.f32 %v67, %v67
  %v70 = vmin.f32 16.0, %v69
  %v71 = vmul.f32 %v70, 2.1237322e-06
  %v72 = vadd.f32 %v71, 0.00028619796
  %v73 = vmul.f32 %v70, %v72
  %v74 = vadd.f32 %v73, 0.0036580483
  %v75 = vmul.f32 %v70, %v74
  %v76 = vadd.f32 %v75, 0.05243302
  %v77 = vmul.f32 %v70, %v76
  %v78 = vadd.f32 %v77, 0.18741608
  %v79 = vmul.f32 %v70, %v78
  %v80 = vadd.f32 %v79, 1.1283791
  %v81 = vmul.f32 %v67, %v80
  %v82 = vmul.f32 %v70, 3.8918573e-05
  %v83 = vadd.f32 %v82, 0.001143296
  %v84 = vmul.f32 %v70, %v83
  %v85 = vadd.f32 %v84, 0.014752088
  %v86 = vmul.f32 %v70, %v85
  %v87 = vadd.f32 %v86, 0.112945676
  %v88 = vmul.f32 %v70, %v87
  %v89 = vadd.f32 %v88, 0.4994258
  %v90 = vmul.f32 %v70, %v89
  %v91 = vadd.f32 %v90, 1.0
  %v92 = vrcp.pop %v91
  %v93 = vmul.f32 %v91, %v92
  %v94 = vsub.f32 1.0, %v93
  %v95 = vmul.f32 %v92, %v94
  %v96 = vadd.f32 %v92, %v95
  %vm97 = vweird.f32 %v91
  %vm98 = vweird.f32 %v92
  %vm99 = vmor %vm97, %vm98
  %v100 = vsel %vm99, %v92, %v96
  %v101 = vand.u32 2147483647, %v91
  %vm102 = vcmp.eq.f32.partialorder %v101, 8.507059e+37
  %v103 = vand.u32 %v91, 2147483648
  %v104 = vor.u32 1.1754944e-38, %v103
  %v105 = vsel %vm102, %v104, %v100
  %v106 = vmul.f32 %v81, %v105
  %v107 = vmin.f32 %v106, 1.0
  %v108 = vmax.f32 %v107, -1.0
  %v109 = vmul.f32 %v68, %v68
  %v110 = vmin.f32 16.0, %v109
  %v111 = vmul.f32 %v110, 2.1237322e-06
  %v112 = vadd.f32 %v111, 0.00028619796
  %v113 = vmul.f32 %v110, %v112
  %v114 = vadd.f32 %v113, 0.0036580483
  %v115 = vmul.f32 %v110, %v114
  %v116 = vadd.f32 %v115, 0.05243302
  %v117 = vmul.f32 %v110, %v116
  %v118 = vadd.f32 %v117, 0.18741608
  %v119 = vmul.f32 %v110, %v118
  %v120 = vadd.f32 %v119, 1.1283791
  %v121 = vmul.f32 %v68, %v120
  %v122 = vmul.f32 %v110, 3.8918573e-05
  %v123 = vadd.f32 %v122, 0.001143296
  %v124 = vmul.f32 %v110, %v123
  %v125 = vadd.f32 %v124, 0.014752088
  %v126 = vmul.f32 %v110, %v125
  %v127 = vadd.f32 %v126, 0.112945676
  %v128 = vmul.f32 %v110, %v127
  %v129 = vadd.f32 %v128, 0.4994258
  %v130 = vmul.f32 %v110, %v129
  %v131 = vadd.f32 %v130, 1.0
  %v132 = vrcp.pop %v131
  %v133 = vmul.f32 %v131, %v132
  %v134 = vsub.f32 1.0, %v133
  %v135 = vmul.f32 %v132, %v134
  %v136 = vadd.f32 %v132, %v135
  %vm137 = vweird.f32 %v131
  %vm138 = vweird.f32 %v132
  %vm139 = vmor %vm137, %vm138
  %v140 = vsel %vm139, %v132, %v136
  %v141 = vand.u32 2147483647, %v131
  %vm142 = vcmp.eq.f32.partialorder %v141, 8.507059e+37
  %v143 = vand.u32 %v131, 2147483648
  %v144 = vor.u32 1.1754944e-38, %v143
  %v145 = vsel %vm142, %v144, %v140
  %v146 = vmul.f32 %v121, %v145
  %v147 = vmin.f32 %v146, 1.0
  %v148 = vmax.f32 %v147, -1.0
  %v149 = vadd.f32 %v108, 1.0
  %v150 = vadd.f32 %v148, 1.0
  %v151 = vmul.f32 %v65, %v149
  %v152 = vmul.f32 %v66, %v150
  %v153 = vld [vmem:[%s3] sm:$0xff]
  %v154 = vld [vmem:[%s3 + $0x8] sm:$0xff]
  %v155 = vld [vmem:[%s3 + $0x10] sm:$0xff]
  %v156 = vld [vmem:[%s3 + $0x18] sm:$0xff]
  %v157 = vld [vmem:[%s3 + $0x20] sm:$0xff]
  %v158 = vld [vmem:[%s3 + $0x28] sm:$0xff]
  %v159 = vld [vmem:[%s3 + $0x30] sm:$0xff]
  %v160 = vld [vmem:[%s3 + $0x38] sm:$0xff]
  %v161 = vld [vmem:[%s3 + $0x40] sm:$0xff]
  %v162 = vld [vmem:[%s3 + $0x48] sm:$0xff]
  %v163 = vld [vmem:[%s3 + $0x50] sm:$0xff]
  %v164 = vld [vmem:[%s3 + $0x58] sm:$0xff]
  %v165 = vld [vmem:[%s3 + $0x60] sm:$0xff]
  %v166 = vld [vmem:[%s3 + $0x68] sm:$0xff]
  %v167 = vld [vmem:[%s3 + $0x70] sm:$0xff]
  %v168 = vld [vmem:[%s3 + $0x78] sm:$0xff]
  %v169 = vld [vmem:[%s4] sm:$0x1]
  %v171 = vperm.slane %v169, 0
  %173 = vmatpush.msra.mxu0 %v168
  %174 = vmatpush.msra.mxu0 %v167
  %175 = vmatpush.msra.mxu0 %v166
  %176 = vmatpush.msra.mxu0 %v165
  %177 = vmatpush.msra.mxu0 %v164
  %178 = vmatpush.msra.mxu0 %v163
  %179 = vmatpush.msra.mxu0 %v162
  %180 = vmatpush.msra.mxu0 %v161
  %181 = vmatpush.msra.mxu0 %v160
  %182 = vmatpush.msra.mxu0 %v159
  %183 = vmatpush.msra.mxu0 %v158
  %184 = vmatpush.msra.mxu0 %v157
  %185 = vmatpush.msra.mxu0 %v156
  %186 = vmatpush.msra.mxu0 %v155
  %187 = vmatpush.msra.mxu0 %v154
  %188 = vmatpush.msra.mxu0 %v153
  %189 = vmatmul.f32.gmra.mxu0 %v151
  %v190 = vpop.f32.mrf.mxu0
  %v191 = vadd.f32 %v171, %v190
  %192 = vmatmul.f32.gmra.mxu0 %v152
  %v193 = vpop.f32.mrf.mxu0
  %v194 = vadd.f32 %v171, %v193
  %195 = vdwg.mxu0
  %196 = vst [vmem:[%s5] sm:$0xff] %v191
  %197 = vst [vmem:[%s5 + $0x8] sm:$0xff] %v194
  // Predicated region
  $region22: #{feed_forward.1} parent=0 // pred_check
    _
  $region23: #{feed_forward.1} parent=0 // pred_check_branch
    %199 = sbr.rel (0) target = $region25
  $region24: #{feed_forward.1} parent=0 // pred_region
    _
  $region25: #{feed_forward.1} parent=0 // pred_fallthru
    _
  // Predicated region
  $region26: #{feed_forward.1} parent=0 // pred_check
    _
  $region27: #{feed_forward.1} parent=0 // pred_check_branch
    %201 = sbr.rel (0) target = $region29
  $region28: #{feed_forward.1} parent=0 // pred_region
    _
  $region29: #{feed_forward.1} parent=0 // pred_fallthru
    _

</llo_original>
